<compile_context>
chip_gen: v6e
topology: v6e:2x2x1
jax: 0.10.0
libtpu: 0.0.40
codegen_flags: <defaults>
</compile_context>

<pallas_src>
from functools import partial

import numpy as np
import jax
import jax.numpy as jnp
from jax.experimental import pallas as pl
from jax.experimental.pallas import tpu as pltpu


def _round_up(x, m):
    return (x + m - 1) // m * m


def _cdiv(a, b):
    return (a + b - 1) // b


# ---------------------------------------------------------------------------
# Simple path: one grid axis over batch blocks; whole C*HW slab per block.
# ---------------------------------------------------------------------------
def _uv_loss_kernel(pred_ref, true_ref, mask_ref, out_ref, *, num_channels, hw):
    # pred_ref / true_ref : (TB, C*HW)  native dtype (f32 or bf16)
    # mask_ref            : (1, HW)     f32, rate/(H*W) and weight/foreface folded in
    # out_ref             : (TB, 1)     f32  per-sample loss
    sq = None
    for c in range(num_channels):               # static unroll, C is tiny
        lo = c * hw                             # lane-aligned when HW % 128 == 0
        d = (pred_ref[:, lo:lo + hw].astype(jnp.float32)
             - true_ref[:, lo:lo + hw].astype(jnp.float32))
        sq = d * d if sq is None else sq + d * d          # (TB, HW) f32, VPU
    dist = jnp.sqrt(sq) * mask_ref[...]                    # EUP sqrt, bcast mul
    out_ref[...] = jnp.sum(dist, axis=-1, keepdims=True)   # (TB, 1)


# ---------------------------------------------------------------------------
# Chunked path: grid (batch, spatial-chunk, channel); sum-of-squares scratch
# accumulated across channels, output accumulated across spatial chunks.
# ---------------------------------------------------------------------------
def _uv_loss_chunked_kernel(pred_ref, true_ref, mask_ref, out_ref, ssq_ref, *,
                            num_channels):
    # pred_ref / true_ref : (TB, SP)  native dtype, channel c / spatial chunk s
    # mask_ref            : (1, SP)   f32 folded mask chunk
    # out_ref             : (TB, 1)   f32 accumulator (resident across s, c)
    # ssq_ref             : (TB, SP)  f32 sum-of-squares scratch
    s = pl.program_id(1)
    c = pl.program_id(2)

    @pl.when(jnp.logical_and(s == 0, c == 0))
    def _():
        out_ref[...] = jnp.zeros_like(out_ref)

    d = (pred_ref[...].astype(jnp.float32)
         - true_ref[...].astype(jnp.float32))
    d2 = d * d

    @pl.when(c == 0)
    def _():
        ssq_ref[...] = d2

    @pl.when(c > 0)
    def _():
        ssq_ref[...] += d2

    @pl.when(c == num_channels - 1)
    def _():
        dist = jnp.sqrt(ssq_ref[...]) * mask_ref[...]
        out_ref[...] += jnp.sum(dist, axis=-1, keepdims=True)


# ---------------------------------------------------------------------------
# Wrapper: tile-size selection + pallas_call.
# ---------------------------------------------------------------------------
def uv_loss_pallas(y_pred, y_true, mask_scaled, *,
                   vmem_input_budget_bytes=24 << 20):
    """y_pred, y_true: (N, C, H, W) float; mask_scaled: (H, W) f32 already
    containing rate / (H*W) and any weight / foreface factors.
    Returns (N,) f32 per-sample loss."""
    N, C, H, W = y_pred.shape
    HW = H * W
    chw = C * HW
    itemsize = jnp.dtype(y_pred.dtype).itemsize
    # sublane packing: 8 rows for 32-bit, 16 for bf16, 32 for 8-bit dtypes
    sub_mult = max(8, 32 // max(1, itemsize))

    # Free reshapes (contiguous NCHW -> (N, C*H*W) is a bitcast); keep dtype.
    p = y_pred.reshape(N, chw)
    t = y_true.reshape(N, chw)
    m = mask_scaled.reshape(1, HW).astype(jnp.float32)

    n_rows = _round_up(N, sub_mult)
    # Batch rows that fit the DMA-buffer budget when each row carries C*HW:
    # 2 inputs x 2 pipeline buffers x tb x chw x itemsize <= budget.
    tb_budget = (vmem_input_budget_bytes // (4 * chw * itemsize)) \
        // sub_mult * sub_mult

    MIN_SIMPLE_ROWS = 64
    use_chunked = (tb_budget < min(MIN_SIMPLE_ROWS, n_rows)) and (HW % 128 == 0)

    flops = int(N) * (3 * C * HW + 2 * HW)
    cost = pl.CostEstimate(flops=flops,
                           transcendentals=int(N) * HW,
                           bytes_accessed=2 * N * chw * itemsize + HW * 4 + N * 4)

    if not use_chunked:
        # NOTE: if HW % 128 != 0 the per-channel slices inside the kernel are
        # lane-unaligned (correct but may relayout); this path is still taken
        # because the chunked BlockSpecs require 128-lane-aligned chunks.
        tb = max(sub_mult, min(tb_budget, n_rows))
        if tb_budget < sub_mult:
            tb = sub_mult          # forced minimum; VMEM limit raised below
        # Keep >= 2 batch blocks when N allows so both v7x cores stream.
        tb = max(sub_mult, min(tb, _round_up(_cdiv(N, 2), sub_mult)))
        nb = _cdiv(N, tb)          # last block may be partial; tail rows dropped

        footprint = (4 * tb * chw * itemsize      # 2 inputs x double buffer
                     + 3 * tb * HW * 4            # f32 compute temporaries
                     + 2 * HW * 4 + 4 * tb * 4)   # mask + output buffers
        vmem_limit = int(min(max(footprint * 3 // 2 + (8 << 20), 16 << 20),
                             56 << 20))

        kern = partial(_uv_loss_kernel, num_channels=C, hw=HW)
        out = pl.pallas_call(
            kern,
            out_shape=jax.ShapeDtypeStruct((N, 1), jnp.float32),
            grid_spec=pltpu.PrefetchScalarGridSpec(
                num_scalar_prefetch=0,
                grid=(nb,),
                in_specs=[
                    pl.BlockSpec((tb, chw), lambda b: (b, 0)),
                    pl.BlockSpec((tb, chw), lambda b: (b, 0)),
                    pl.BlockSpec((1, HW), lambda b: (0, 0)),
                ],
                out_specs=pl.BlockSpec((tb, 1), lambda b: (b, 0)),
            ),
            compiler_params=pltpu.CompilerParams(
                dimension_semantics=("parallel",),
                vmem_limit_bytes=vmem_limit),
            cost_estimate=cost,
        )(p, t, m)
        return out.reshape(N)

    # ---- chunked path (large C*H*W) ----
    tb = max(sub_mult, min(128, n_rows))
    tb = max(sub_mult, min(tb, _round_up(_cdiv(N, 2), sub_mult)))
    # Largest 128-lane multiple divisor of HW whose tile fits the budget
    # (2 inputs x 2 buffers + f32 scratch/temporaries per lane).
    per_lane_bytes = tb * (4 * itemsize + 3 * 4)
    sp_units_max = max(1, vmem_input_budget_bytes // (per_lane_bytes * 128))
    n128 = HW // 128
    best = 1
    for dcand in range(1, n128 + 1):
        if n128 % dcand == 0 and dcand <= sp_units_max:
            best = dcand
    sp = best * 128
    n_sp = HW // sp
    nb = _cdiv(N, tb)

    footprint = (4 * tb * sp * itemsize           # inputs, double-buffered
                 + 3 * tb * sp * 4                # ssq scratch + temporaries
                 + 2 * sp * 4 + 4 * tb * 4)
    vmem_limit = int(min(max(footprint * 3 // 2 + (8 << 20), 16 << 20),
                         56 << 20))

    # TODO(synk): if tb*sp*itemsize ends up < ~1 MiB, pipeline_mode=pl.Buffered(3)
    # on the two input BlockSpecs could hide per-step DMA issue latency.
    kern = partial(_uv_loss_chunked_kernel, num_channels=C)
    out = pl.pallas_call(
        kern,
        out_shape=jax.ShapeDtypeStruct((N, 1), jnp.float32),
        grid_spec=pltpu.PrefetchScalarGridSpec(
            num_scalar_prefetch=0,
            grid=(nb, n_sp, C),
            in_specs=[
                pl.BlockSpec((tb, sp), lambda b, s, c: (b, c * n_sp + s)),
                pl.BlockSpec((tb, sp), lambda b, s, c: (b, c * n_sp + s)),
                pl.BlockSpec((1, sp), lambda b, s, c: (0, s)),
            ],
            out_specs=pl.BlockSpec((tb, 1), lambda b, s, c: (b, 0)),
            scratch_shapes=[pltpu.VMEM((tb, sp), jnp.float32)],
        ),
        compiler_params=pltpu.CompilerParams(
            dimension_semantics=("parallel", "arbitrary", "arbitrary"),
            vmem_limit_bytes=vmem_limit),
        cost_estimate=cost,
    )(p, t, m)
    return out.reshape(N)


# ---------------------------------------------------------------------------
# Module-level "parameters" (deterministic, synthetic — no checkpoint load).
# ---------------------------------------------------------------------------
def make_masks(H, W):
    yy, xx = np.meshgrid(np.arange(H), np.arange(W), indexing="ij")
    # binary face mask: circular foreface region
    face_mask_np = (((yy - H / 2.0) ** 2 + (xx - W / 2.0) ** 2)
                    <= (H / 2.5) ** 2).astype(np.float32)
    # deterministic weight mask, divided by 16 as in the original module
    weight_mask_np = (1.0 + (xx + yy) % 5).astype(np.float32) / 16.0
    return face_mask_np, weight_mask_np


class UVLossPallas:
    """Mirror of the PyTorch UVLoss module (non-NME paths) using the Pallas kernel."""

    def __init__(self, H, W, is_foreface=False, is_weighted=False,
                 is_nme=False, rate=1.0, vmem_input_budget_bytes=24 << 20):
        face_mask_np, weight_mask_np = make_masks(H, W)
        self.face_mask = jnp.asarray(face_mask_np)
        self.weight_mask = jnp.asarray(weight_mask_np)
        self.face_mask_mean_fix_rate = float(H * W) / float(face_mask_np.sum())
        self.is_foreface = is_foreface
        self.is_weighted = is_weighted
        self.is_nme = is_nme
        self.rate = rate
        self.vmem_input_budget_bytes = vmem_input_budget_bytes

        # Combined mask with rate and the uniform spatial mean (1/(H*W))
        # folded in, so the kernel's masked sum IS the final loss.
        mask = np.ones((H, W), np.float32)
        if is_weighted:
            mask = mask * weight_mask_np
        if is_foreface:
            mask = mask * (face_mask_np * self.face_mask_mean_fix_rate)
        self.mask_scaled = jnp.asarray(mask * (rate / float(H * W)),
                                       dtype=jnp.float32)

    def __call__(self, y_pred, y_true):
        if self.is_nme:
            # TODO(synk): NME branch (data-dependent gather over foreface
            # indices + per-sample bbox normalization) not ported to Pallas.
            raise NotImplementedError("NME path not implemented in Pallas")
        return uv_loss_pallas(
            y_pred, y_true, self.mask_scaled,
            vmem_input_budget_bytes=self.vmem_input_budget_bytes)


# ---------------------------------------------------------------------------
# Pure-JAX reference (matches PyTorch semantics) for verification.
# ---------------------------------------------------------------------------
def uv_loss_ref(y_pred, y_true, mask, rate=1.0):
    dist = jnp.sqrt(jnp.sum((y_true - y_pred) ** 2, axis=1))  # (N, H, W)
    dist = dist * mask[None]
    loss = jnp.mean(jnp.mean(dist, axis=2), axis=1)
    return loss * rate


if __name__ == "__main__":
    N, C, H, W = 2, 3, 16, 16   # UV position maps: 3 channels (x, y, z)
    key = jax.random.PRNGKey(0)
    k1, k2 = jax.random.split(key)
    y_pred = jax.random.normal(k1, (N, C, H, W), dtype=jnp.float32)
    y_true = jax.random.normal(k2, (N, C, H, W), dtype=jnp.float32)

    # 1) default (no masks) and weighted+foreface configs, f32 inputs, simple path
    for is_w, is_f in [(False, False), (True, True)]:
        mod = UVLossPallas(H, W, is_foreface=is_f, is_weighted=is_w, rate=1.0)
        out = mod(y_pred, y_true)
        jax.block_until_ready(out)

        mask = jnp.ones((H, W), jnp.float32)
        if is_w:
            mask = mask * mod.weight_mask
        if is_f:
            mask = mask * (mod.face_mask * mod.face_mask_mean_fix_rate)
        ref = uv_loss_ref(y_pred, y_true, mask, rate=1.0)
        assert out.shape == (N,)
        assert jnp.allclose(out, ref, rtol=1e-5, atol=1e-5), (out, ref)

    # 2) bf16 inputs, batch not a multiple of the tile (exercises the
    #    pad-free partial last block).
    N2 = 10
    yp_bf = jax.random.normal(k1, (N2, C, H, W), jnp.float32).astype(jnp.bfloat16)
    yt_bf = jax.random.normal(k2, (N2, C, H, W), jnp.float32).astype(jnp.bfloat16)
    mod = UVLossPallas(H, W, is_foreface=True, is_weighted=True, rate=0.5)
    out = mod(yp_bf, yt_bf)
    jax.block_until_ready(out)
    mask = (jnp.ones((H, W), jnp.float32) * mod.weight_mask
            * (mod.face_mask * mod.face_mask_mean_fix_rate))
    ref = uv_loss_ref(yp_bf.astype(jnp.float32), yt_bf.astype(jnp.float32),
                      mask, rate=0.5)
    assert out.shape == (N2,)
    assert jnp.allclose(out, ref, rtol=1e-4, atol=1e-4), (out, ref)

    # 3) force the chunked (channel/spatial-split) fallback path with a tiny
    #    VMEM budget; f32 inputs, partial batch block + accumulator grid.
    mod = UVLossPallas(H, W, is_foreface=True, is_weighted=True, rate=2.0)
    yp = jax.random.normal(k1, (N2, C, H, W), jnp.float32)
    yt = jax.random.normal(k2, (N2, C, H, W), jnp.float32)
    out = uv_loss_pallas(yp, yt, mod.mask_scaled,
                         vmem_input_budget_bytes=1 << 14)
    jax.block_until_ready(out)
    mask = (jnp.ones((H, W), jnp.float32) * mod.weight_mask
            * (mod.face_mask * mod.face_mask_mean_fix_rate))
    ref = uv_loss_ref(yp, yt, mask, rate=2.0)
    assert out.shape == (N2,)
    assert jnp.allclose(out, ref, rtol=1e-5, atol=1e-5), (out, ref)

    print("KERNEL_OK")
</pallas_src>

<mosaic_0001>
module attributes {stable_mosaic.version = 11 : i64} {
  func.func @_uv_loss_kernel(%arg0: i32, %arg1: memref<8x768xf32, #tpu.memory_space<vmem>>, %arg2: memref<8x768xf32, #tpu.memory_space<vmem>>, %arg3: memref<1x256xf32, #tpu.memory_space<vmem>>, %arg4: memref<8x1xf32, #tpu.memory_space<vmem>>) attributes {dimension_semantics = [#tpu.dimension_semantics<parallel>], iteration_bounds = array<i64: 1>, scalar_prefetch = 0 : i64, scratch_operands = 0 : i64, tpu.core_type = #tpu.core_type<tc>, window_params = [{transform_indices = @transform_0, window_bounds = array<i64: 8, 768>}, {transform_indices = @transform_1, window_bounds = array<i64: 8, 768>}, {pipeline_mode = #tpu.pipeline_mode<synchronous>, transform_indices = @transform_2, window_bounds = array<i64: 1, 256>}, {transform_indices = @transform_3, window_bounds = array<i64: 8, 1>}]} {
    %c0 = arith.constant 0 : index
    %c0_0 = arith.constant 0 : index
    %0 = vector.load %arg1[%c0, %c0_0] : memref<8x768xf32, #tpu.memory_space<vmem>>, vector<8x256xf32>
    %c0_1 = arith.constant 0 : index
    %c0_2 = arith.constant 0 : index
    %1 = vector.load %arg2[%c0_1, %c0_2] : memref<8x768xf32, #tpu.memory_space<vmem>>, vector<8x256xf32>
    %2 = arith.subf %0, %1 : vector<8x256xf32>
    %3 = arith.mulf %2, %2 : vector<8x256xf32>
    %c0_3 = arith.constant 0 : index
    %c256 = arith.constant 256 : index
    %4 = vector.load %arg1[%c0_3, %c256] : memref<8x768xf32, #tpu.memory_space<vmem>>, vector<8x256xf32>
    %c0_4 = arith.constant 0 : index
    %c256_5 = arith.constant 256 : index
    %5 = vector.load %arg2[%c0_4, %c256_5] : memref<8x768xf32, #tpu.memory_space<vmem>>, vector<8x256xf32>
    %6 = arith.subf %4, %5 : vector<8x256xf32>
    %7 = arith.mulf %6, %6 : vector<8x256xf32>
    %8 = arith.addf %3, %7 : vector<8x256xf32>
    %c0_6 = arith.constant 0 : index
    %c512 = arith.constant 512 : index
    %9 = vector.load %arg1[%c0_6, %c512] : memref<8x768xf32, #tpu.memory_space<vmem>>, vector<8x256xf32>
    %c0_7 = arith.constant 0 : index
    %c512_8 = arith.constant 512 : index
    %10 = vector.load %arg2[%c0_7, %c512_8] : memref<8x768xf32, #tpu.memory_space<vmem>>, vector<8x256xf32>
    %11 = arith.subf %9, %10 : vector<8x256xf32>
    %12 = arith.mulf %11, %11 : vector<8x256xf32>
    %13 = arith.addf %8, %12 : vector<8x256xf32>
    %14 = math.sqrt %13 : vector<8x256xf32>
    %c0_9 = arith.constant 0 : index
    %c0_10 = arith.constant 0 : index
    %15 = vector.load %arg3[%c0_9, %c0_10] : memref<1x256xf32, #tpu.memory_space<vmem>>, vector<1x256xf32>
    %16 = vector.broadcast %15 : vector<1x256xf32> to vector<8x256xf32>
    %17 = arith.mulf %14, %16 : vector<8x256xf32>
    %cst = arith.constant dense<0.000000e+00> : vector<8xf32>
    %18 = vector.multi_reduction <add>, %17, %cst [1] : vector<8x256xf32> to vector<8xf32>
    %19 = vector.shape_cast %18 : vector<8xf32> to vector<8x1xf32>
    %c0_11 = arith.constant 0 : index
    %c0_12 = arith.constant 0 : index
    %20 = vector.load %arg4[%c0_11, %c0_12] : memref<8x1xf32, #tpu.memory_space<vmem>>, vector<8x1xf32>
    tpu.vector_store %arg4[%c0_11, %c0_12], %19 {strides = array<i32>} : memref<8x1xf32, #tpu.memory_space<vmem>>, vector<8x1xf32>,
    return
  }
  func.func @transform_0(%arg0: i32) -> (i32, i32) {
    %c0_i32 = arith.constant 0 : i32
    %c0_i32_0 = arith.constant 0 : i32
    return %arg0, %c0_i32 : i32, i32
  }
  func.func @transform_1(%arg0: i32) -> (i32, i32) {
    %c0_i32 = arith.constant 0 : i32
    %c0_i32_0 = arith.constant 0 : i32
    return %arg0, %c0_i32 : i32, i32
  }
  func.func @transform_2(%arg0: i32) -> (i32, i32) {
    %c0_i32 = arith.constant 0 : i32
    %c0_i32_0 = arith.constant 0 : i32
    %c0_i32_1 = arith.constant 0 : i32
    return %c0_i32, %c0_i32_0 : i32, i32
  }
  func.func @transform_3(%arg0: i32) -> (i32, i32) {
    %c0_i32 = arith.constant 0 : i32
    %c0_i32_0 = arith.constant 0 : i32
    return %arg0, %c0_i32 : i32, i32
  }
}

</mosaic_0001>

<llo_original>
// kernel: tpu_custom_call.1
$region0: #{tpu_custom_call.1}
  #allocation0 [shape = 'u32[]', space=smem, size = 0x4, offset = 0x4, fixed_abs, tag = 'smem constant byte address 0x4 - core index']
  #allocation1 [shape = 'u32[144,128]{1,0:T(1,128)}', space=vmem, size = 0x12000, scoped, tag = 'internal scratch']
  %s0 = inlined_call_operand.hbm [shape: f32[2,768], index: 0, kind: input, shape index: {}]
  %s1 = inlined_call_operand.hbm [shape: f32[2,768], index: 1, kind: input, shape index: {}]
  %s2 = inlined_call_operand.vmem [shape: f32[1,256], index: 2, kind: input, shape index: {}]
  %s3 = inlined_call_operand.vmem [shape: f32[2,1], index: 3, kind: output, shape index: {}]
  %s4 = sld [smem:[#allocation0]]
  $region60: #{tpu_custom_call.1} parent=0
    _
  %s6 = ssub.s32 1, %s4
  %s7 = scalar_select 0, %s6, %s4
  $region1: #{tpu_custom_call.1} parent=0
    #allocation2 [shape = 'u8[24576]{0}', space=vmem, size = 0x6000, scoped, tag = 'input window, operand 0, single buffered']
    #allocation3 [shape = 's32[1]{0}', space=sflag, size = 0x4, scoped, tag = 'scoped memory for tpu_custom_call.1']
    #allocation4 [shape = 'u8[24576]{0}', space=vmem, size = 0x6000, scoped, tag = 'input window, operand 1, single buffered']
    #allocation5 [shape = 's32[1]{0}', space=sflag, size = 0x4, scoped, tag = 'scoped memory for tpu_custom_call.1']
    #allocation6 [shape = 'u8[4096]{0}', space=vmem, size = 0x1000, scoped, tag = 'output window, operand 0, single buffered']
    %8 = vsyncpa [#allocation3], 0
    %9 = vsyncpa [#allocation5], 0
    // Predicated region
    $region2: #{tpu_custom_call.1} parent=1 // pred_check
      _
    $region3: #{tpu_custom_call.1} parent=1 // pred_check_branch
      %11 = sbr.rel (0) target = $region5
    $region4: #{tpu_custom_call.1} parent=1 // pred_region
      %s13 = ssub.s32 768, 192
      %14 = vsyncadd [#allocation3], %s13
      %s15 = sshll.u32 [#allocation2], 4
      %s16 = int_to_ptr.vmem [resolvable:$true] %s15
      %21 = dma.hbm_to_vmem [thread:$0]  %s0, 192, %s16, [#allocation3], 192, 192, 12
    $region5: #{tpu_custom_call.1} parent=1 // pred_fallthru
      _
    // Predicated region
    $region6: #{tpu_custom_call.1} parent=1 // pred_check
      _
    $region7: #{tpu_custom_call.1} parent=1 // pred_check_branch
      %23 = sbr.rel (0) target = $region9
    $region8: #{tpu_custom_call.1} parent=1 // pred_region
      %s25 = ssub.s32 768, 192
      %26 = vsyncadd [#allocation5], %s25
      %s27 = sshll.u32 [#allocation4], 4
      %s28 = int_to_ptr.vmem [resolvable:$true] %s27
      %33 = dma.hbm_to_vmem [thread:$0]  %s1, 192, %s28, [#allocation5], 192, 192, 12
    $region9: #{tpu_custom_call.1} parent=1 // pred_fallthru
      _
    // Predicated region
    $region10: #{tpu_custom_call.1} parent=1 // pred_check
      _
    $region11: #{tpu_custom_call.1} parent=1 // pred_check_branch
      %35 = sbr.rel (0) target = $region13
    $region12: #{tpu_custom_call.1} parent=1 // pred_region
      _
    $region13: #{tpu_custom_call.1} parent=1 // pred_fallthru
      _
    // Predicated region
    $region14: #{tpu_custom_call.1} parent=1 // pred_check
      _
    $region15: #{tpu_custom_call.1} parent=1 // pred_check_branch
      %37 = sbr.rel (0) target = $region17
    $region16: #{tpu_custom_call.1} parent=1 // pred_region
      %38 = dma.done [#allocation3], 768
    $region17: #{tpu_custom_call.1} parent=1 // pred_fallthru
      _
    // Predicated region
    $region18: #{tpu_custom_call.1} parent=1 // pred_check
      _
    $region19: #{tpu_custom_call.1} parent=1 // pred_check_branch
      %40 = sbr.rel (0) target = $region21
    $region20: #{tpu_custom_call.1} parent=1 // pred_region
      %41 = dma.done [#allocation5], 768
    $region21: #{tpu_custom_call.1} parent=1 // pred_fallthru
      _
    %v42 = vld [vmem:[#allocation2] sm:$0xf]
    %v43 = vld [vmem:[#allocation2 + $0xc] sm:$0xf]
    %v44 = vld [vmem:[#allocation2 + $0x18] sm:$0xf]
    %v45 = vld [vmem:[#allocation2 + $0x24] sm:$0xf]
    %v46 = vld [vmem:[#allocation4] sm:$0xf]
    %v47 = vld [vmem:[#allocation4 + $0xc] sm:$0xf]
    %v48 = vld [vmem:[#allocation4 + $0x18] sm:$0xf]
    %v49 = vld [vmem:[#allocation4 + $0x24] sm:$0xf]
    %v50 = vsub.f32 %v42, %v46
    %v51 = vsub.f32 %v43, %v47
    %v52 = vsub.f32 %v44, %v48
    %v53 = vsub.f32 %v45, %v49
    %v54 = vmul.f32 %v50, %v50
    %v55 = vmul.f32 %v51, %v51
    %v56 = vmul.f32 %v52, %v52
    %v57 = vmul.f32 %v53, %v53
    %v58 = vld [vmem:[#allocation2 + $0x4] sm:$0xf]
    %v59 = vld [vmem:[#allocation2 + $0x10] sm:$0xf]
    %v60 = vld [vmem:[#allocation2 + $0x1c] sm:$0xf]
    %v61 = vld [vmem:[#allocation2 + $0x28] sm:$0xf]
    %v62 = vld [vmem:[#allocation4 + $0x4] sm:$0xf]
    %v63 = vld [vmem:[#allocation4 + $0x10] sm:$0xf]
    %v64 = vld [vmem:[#allocation4 + $0x1c] sm:$0xf]
    %v65 = vld [vmem:[#allocation4 + $0x28] sm:$0xf]
    %v66 = vsub.f32 %v58, %v62
    %v67 = vsub.f32 %v59, %v63
    %v68 = vsub.f32 %v60, %v64
    %v69 = vsub.f32 %v61, %v65
    %v70 = vmul.f32 %v66, %v66
    %v71 = vmul.f32 %v67, %v67
    %v72 = vmul.f32 %v68, %v68
    %v73 = vmul.f32 %v69, %v69
    %v74 = vadd.f32 %v54, %v70
    %v75 = vadd.f32 %v55, %v71
    %v76 = vadd.f32 %v56, %v72
    %v77 = vadd.f32 %v57, %v73
    %v78 = vld [vmem:[#allocation2 + $0x8] sm:$0xf]
    %v79 = vld [vmem:[#allocation2 + $0x14] sm:$0xf]
    %v80 = vld [vmem:[#allocation2 + $0x20] sm:$0xf]
    %v81 = vld [vmem:[#allocation2 + $0x2c] sm:$0xf]
    %v82 = vld [vmem:[#allocation4 + $0x8] sm:$0xf]
    %v83 = vld [vmem:[#allocation4 + $0x14] sm:$0xf]
    %v84 = vld [vmem:[#allocation4 + $0x20] sm:$0xf]
    %v85 = vld [vmem:[#allocation4 + $0x2c] sm:$0xf]
    %v86 = vsub.f32 %v78, %v82
    %v87 = vsub.f32 %v79, %v83
    %v88 = vsub.f32 %v80, %v84
    %v89 = vsub.f32 %v81, %v85
    %v90 = vmul.f32 %v86, %v86
    %v91 = vmul.f32 %v87, %v87
    %v92 = vmul.f32 %v88, %v88
    %v93 = vmul.f32 %v89, %v89
    %v94 = vadd.f32 %v74, %v90
    %v95 = vadd.f32 %v75, %v91
    %v96 = vadd.f32 %v76, %v92
    %v97 = vadd.f32 %v77, %v93
    %v98 = vrsqrt.pop %v94
    %v99 = vmul.f32 %v94, %v98
    %vm100 = vcmp.eq.f32.partialorder %v94, inf
    %v101 = vsel %vm100, %v94, %v99
    %vm102 = vcmp.eq.f32.partialorder %v94, 0.0
    %v103 = vand.u32 %v94, 2147483648
    %v104 = vsel %vm102, %v103, %v101
    %v105 = vrsqrt.pop %v95
    %v106 = vmul.f32 %v95, %v105
    %vm107 = vcmp.eq.f32.partialorder %v95, inf
    %v108 = vsel %vm107, %v95, %v106
    %vm109 = vcmp.eq.f32.partialorder %v95, 0.0
    %v110 = vand.u32 %v95, 2147483648
    %v111 = vsel %vm109, %v110, %v108
    %v112 = vrsqrt.pop %v96
    %v113 = vmul.f32 %v96, %v112
    %vm114 = vcmp.eq.f32.partialorder %v96, inf
    %v115 = vsel %vm114, %v96, %v113
    %vm116 = vcmp.eq.f32.partialorder %v96, 0.0
    %v117 = vand.u32 %v96, 2147483648
    %v118 = vsel %vm116, %v117, %v115
    %v119 = vrsqrt.pop %v97
    %v120 = vmul.f32 %v97, %v119
    %vm121 = vcmp.eq.f32.partialorder %v97, inf
    %v122 = vsel %vm121, %v97, %v120
    %vm123 = vcmp.eq.f32.partialorder %v97, 0.0
    %v124 = vand.u32 %v97, 2147483648
    %v125 = vsel %vm123, %v124, %v122
    %v126 = vld [vmem:[%s2] sm:$0x3]
    %v128 = vlaneseq
    %v129 = vshrl.u32 %v128, 7
    %v130 = vsub.s32 0, %v129
    %v131 = vrot.slane %v126, %v130
    %v132 = vlaneseq
    %v133 = vshrl.u32 %v132, 7
    %v134 = vsub.s32 1, %v133
    %v135 = vrot.slane %v126, %v134
    %v136 = vcombine.low %v131, %v135
    %v137 = vcombine.high %v131, %v135
    %v139 = vunpack.c.l.s4 1983009808
    %v140 = vunpack.c.0.s8 %v139
    %v141 = vlaneseq
    %v142 = vshrl.u32 %v141, 7
    %v143 = vsub.s32 %v140, %v142
    %v144 = vrot.slane %v136, %v143
    %v146 = vunpack.c.l.s4 1983009808
    %v147 = vunpack.c.0.s8 %v146
    %v148 = vlaneseq
    %v149 = vshrl.u32 %v148, 7
    %v150 = vsub.s32 %v147, %v149
    %v151 = vrot.slane %v137, %v150
    %v152 = vcombine.high %v144, %v144
    %v153 = vcombine.high %v151, %v151
    %v158 = vmul.f32 %v104, %v144
    %v159 = vmul.f32 %v111, %v152
    %v160 = vmul.f32 %v118, %v151
    %v161 = vmul.f32 %v125, %v153
    %v166 = vcombine.low %v158, %v159
    %v167 = vcombine.low %v160, %v161
    %v169 = vunpack.c.l.s4 1983009808
    %v170 = vunpack.c.0.s8 %v169
    %v171 = vlaneseq
    %v172 = vshrl.u32 %v171, 7
    %v173 = vsub.s32 %v170, %v172
    %v174 = vrot.slane %v166, %v173
    %v176 = vunpack.c.l.s4 1983009808
    %v177 = vunpack.c.0.s8 %v176
    %v178 = vlaneseq
    %v179 = vshrl.u32 %v178, 7
    %v180 = vsub.s32 %v177, %v179
    %v181 = vrot.slane %v167, %v180
    %v182 = vcombine.low %v174, %v181
    %v183 = vcombine.high %v174, %v181
    %v186 = vadd.f32 %v182, %v183
    %187 = vadd.xlane.f32.xlu0 %v186
    %v188 = vpop.xlane.xlu0 %187
    %vm189 = vcmask 7168
    %190 = vst.msk [vmem:[#allocation6] sm:$0xff] %vm189, %v188
    // Predicated region
    $region22: #{tpu_custom_call.1} parent=1 // pred_check
      _
    $region23: #{tpu_custom_call.1} parent=1 // pred_check_branch
      %192 = sbr.rel (0) target = $region25
    $region24: #{tpu_custom_call.1} parent=1 // pred_region
      // Predicated region
      $region26: #{tpu_custom_call.1} parent=24 // pred_check
        _
      $region27: #{tpu_custom_call.1} parent=24 // pred_check_branch
        %194 = sbr.rel (0) target = $region29
      $region28: #{tpu_custom_call.1} parent=24 // pred_region
        // Predicated region
        $region30: #{tpu_custom_call.1} parent=28 // pred_check
          _
        $region31: #{tpu_custom_call.1} parent=28 // pred_check_branch
          %196 = sbr.rel target = $region33
        $region32: #{tpu_custom_call.1} parent=28 // pred_region
          // Predicated region
          $region45: #{tpu_custom_call.1} parent=32 // pred_check
            _
          $region46: #{tpu_custom_call.1} parent=32 // pred_check_branch
            %212 = sbr.rel (0) target = $region48
          $region47: #{tpu_custom_call.1} parent=32 // pred_region
            %s214 = ssub.s32 4, 1
            loop: start=0, step=1, limit=1
            $region49: #{tpu_custom_call.1} parent=47 // loop_pre_header
              _
            $region50: #{tpu_custom_call.1} parent=47 // loop_header
              %s216 = sphi 0, %s220
              %p217 = scmp.ge.s32.totalorder %s216, 1
              %s221 = sphi [#allocation6], [#allocation6]
              %s222 = sphi %s3, %s3
            $region51: #{tpu_custom_call.1} parent=47 // loop_header_branch
              %219 = sbr.rel (%p217) target = $region55
            $region52: #{tpu_custom_call.1} parent=47 // loop_body
              %v223 = vld [vmem:[%s221] sm:%s214]
              %224 = vst [vmem:[%s222] sm:%s214] %v223
            $region53: #{tpu_custom_call.1} parent=47 // loop_footer
              %s220 = sadd.s32 1, %s216
            $region54: #{tpu_custom_call.1} parent=47 // loop_footer_branch
              %215 = sbr.rel target = $region50
            $region55: #{tpu_custom_call.1} parent=47 // loop_exit
              _
          $region48: #{tpu_custom_call.1} parent=32 // pred_fallthru
            _
        $region33: #{tpu_custom_call.1} parent=28 // pred_fallthru
          _
        // Predicated region
        $region34: #{tpu_custom_call.1} parent=28 // pred_check
          _
        $region35: #{tpu_custom_call.1} parent=28 // pred_check_branch
          %198 = sbr.rel (0) target = $region37
        $region36: #{tpu_custom_call.1} parent=28 // pred_region
          %s200 = ssub.s32 4, 1
          loop: start=0, step=1, limit=1
          $region38: #{tpu_custom_call.1} parent=36 // loop_pre_header
            _
          $region39: #{tpu_custom_call.1} parent=36 // loop_header
            %s202 = sphi 0, %s206
            %p203 = scmp.ge.s32.totalorder %s202, 1
            %s207 = sphi [#allocation6], [#allocation6]
            %s208 = sphi %s3, %s3
          $region40: #{tpu_custom_call.1} parent=36 // loop_header_branch
            %205 = sbr.rel (%p203) target = $region44
          $region41: #{tpu_custom_call.1} parent=36 // loop_body
            %v209 = vld [vmem:[%s207] sm:%s200]
            %210 = vst [vmem:[%s208] sm:%s200] %v209
          $region42: #{tpu_custom_call.1} parent=36 // loop_footer
            %s206 = sadd.s32 1, %s202
          $region43: #{tpu_custom_call.1} parent=36 // loop_footer_branch
            %201 = sbr.rel target = $region39
          $region44: #{tpu_custom_call.1} parent=36 // loop_exit
            _
        $region37: #{tpu_custom_call.1} parent=28 // pred_fallthru
          _
      $region29: #{tpu_custom_call.1} parent=24 // pred_fallthru
        _
      %225 = vnop
    $region25: #{tpu_custom_call.1} parent=1 // pred_fallthru
      _
    // Predicated region
    $region56: #{tpu_custom_call.1} parent=1 // pred_check
      _
    $region57: #{tpu_custom_call.1} parent=1 // pred_check_branch
      %227 = sbr.rel (0) target = $region59
    $region58: #{tpu_custom_call.1} parent=1 // pred_region
      _
    $region59: #{tpu_custom_call.1} parent=1 // pred_fallthru
      _
    %228 = vsyncpa [#allocation3], 1
    %229 = vsyncpa [#allocation5], 1

</llo_original>
